<compile_context>
chip_gen: v7x
topology: tpu7x:2x2x1
jax: 0.10.0
libtpu: 0.0.40
codegen_flags: <defaults>
</compile_context>

<pallas_src>
import functools

import jax
import jax.numpy as jnp
from jax.experimental import pallas as pl
from jax.experimental.pallas import tpu as pltpu

_MIB = 1024 * 1024


def _gelu_new(x):
    # HF "gelu_new" (tanh approximation), matches ACT2FN["gelu_new"].
    c = 0.7978845608028654  # sqrt(2/pi)
    return 0.5 * x * (1.0 + jnp.tanh(c * (x + 0.044715 * x * x * x)))


def _round_up(x, n):
    return (x + n - 1) // n * n


def _cdiv(a, b):
    return (a + b - 1) // b


def _gated_ffn_kernel(x_ref, wi0_ref, wi1_ref, wo_ref, o_ref, acc_ref):
    f = pl.program_id(1)

    @pl.when(f == 0)
    def _():
        acc_ref[...] = jnp.zeros_like(acc_ref)

    x = x_ref[...]
    # Two MXU matmuls on the VMEM-resident X tile, f32 accumulation.
    h0 = jnp.dot(x, wi0_ref[...], preferred_element_type=jnp.float32)
    h1 = jnp.dot(x, wi1_ref[...], preferred_element_type=jnp.float32)
    g = (_gelu_new(h0) * h1).astype(wo_ref.dtype)   # tanh -> EUP; cast matches torch
    # Partial output projection for this d_ff slice, accumulated in f32.
    acc_ref[...] += jnp.dot(g, wo_ref[...], preferred_element_type=jnp.float32)

    @pl.when(f == pl.num_programs(1) - 1)
    def _():
        o_ref[...] = acc_ref[...].astype(o_ref.dtype)


def _tpu_vmem_and_dualtc():
    """Physical VMEM bytes (conservative fallback 64 MiB) and dual-TC hint."""
    phys = None
    try:
        info = pltpu.get_tpu_info()
        cap = getattr(info, "vmem_capacity_bytes", None)
        if cap:
            phys = int(cap)
    except Exception:
        phys = None
    kind = ""
    try:
        kind = jax.devices()[0].device_kind.lower()
    except Exception:
        kind = ""
    dual_tc = ("7x" in kind) or ("v7" in kind) or (
        phys is not None and phys <= 64 * _MIB)
    if phys is None:
        phys = 64 * _MIB  # conservative: assume the smallest (v7x-sized) VMEM
    return phys, dual_tc


def _working_set_bytes(tm, tf, d_model, act_isz, w_isz, wo_isz):
    """Per-step VMEM working set, incl. double buffers and f32 temporaries."""
    return (
        2 * tm * d_model * act_isz        # X tile (double-buffered)
        + 2 * 2 * d_model * tf * w_isz    # Wi0 + Wi1 tiles (double-buffered)
        + 2 * tf * d_model * wo_isz       # Wo tile (double-buffered)
        + 2 * tm * d_model * act_isz      # output tile (double-buffered)
        + tm * d_model * 4                # f32 accumulator scratch
        + 2 * tm * tf * 4                 # f32 h0, h1
        + tm * tf * (4 + wo_isz)          # f32 gelu temp + cast g tile
    )


def _tf_candidates(d_ff):
    if d_ff % 128 != 0:
        return [d_ff]  # unaligned d_ff: single full-width tile (correct, slower)
    return [f for f in range(128, d_ff + 1, 128) if d_ff % f == 0]


def _choose_tiles(m, d_model, d_ff, pack, act_isz, w_isz, wo_isz,
                  tile_m, tile_f, budget, tile_m_cap, dual_tc):
    cands = _tf_candidates(d_ff)
    big = [c for c in cands if c >= 256]
    tf_floor = min(big) if big else max(cands)   # K >= 256 for the 256x256 MXU
    tf0 = tile_f if tile_f is not None else tf_floor

    if tile_m is not None:
        tm_target = max(pack, _round_up(tile_m, pack))
    else:
        # Maximize tile_m FIRST (it sets arithmetic intensity: weights are
        # re-streamed once per M tile), evaluated at the tile_f floor.
        cap = min(tile_m_cap, max(pack, _round_up(m, pack)))
        tm_target = pack
        tm = _round_up(cap, pack)
        while tm >= pack:
            if _working_set_bytes(tm, tf0, d_model, act_isz, w_isz, wo_isz) <= budget:
                tm_target = tm
                break
            tm -= pack

    # Minimize ragged-M padding: spread rows evenly over the implied tiles.
    n_m = max(1, _cdiv(m, tm_target))
    if dual_tc and n_m == 1 and m > pack and tile_m is None:
        n_m = 2  # keep the second TensorCore busy on v7x for single-tile M
    tm_eff = max(pack, _round_up(_cdiv(m, n_m), pack))

    if tile_f is not None:
        tf_eff = tile_f
    else:
        tf_eff = tf0
        if _working_set_bytes(tm_eff, tf_eff, d_model, act_isz, w_isz,
                              wo_isz) > budget:
            # Floor doesn't fit (tiny budget / huge d_model): back off.
            for c in reversed(cands):
                if c < tf0 and _working_set_bytes(
                        tm_eff, c, d_model, act_isz, w_isz, wo_isz) <= budget:
                    tf_eff = c
                    break
        else:
            # Grow tile_f (fewer grid steps, better DMA amortization) with the
            # leftover budget; beyond ~1024 it buys little.
            for c in cands:
                if tf_eff < c <= 1024 and _working_set_bytes(
                        tm_eff, c, d_model, act_isz, w_isz, wo_isz) <= budget:
                    tf_eff = c
    return tm_eff, n_m, tf_eff


@functools.partial(jax.jit, static_argnames=("tile_m", "tile_f"))
def umt5_dense_gated_act_dense(hidden_states, wi0, wi1, wo, *, tile_m=None,
                               tile_f=None):
    """hidden_states: [B, S, d_model]; wi0/wi1: [d_model, d_ff]; wo: [d_ff, d_model]."""
    b, s, d_model = hidden_states.shape
    d_ff = wi0.shape[1]
    m = b * s
    dtype = hidden_states.dtype
    act_isz = jnp.dtype(dtype).itemsize
    w_isz = jnp.dtype(wi0.dtype).itemsize
    wo_isz = jnp.dtype(wo.dtype).itemsize
    pack = max(8, 32 // act_isz)  # sublane packing: 8 (f32) / 16 (bf16)

    # Generation-aware VMEM budget / limit.
    phys_vmem, dual_tc = _tpu_vmem_and_dualtc()
    if phys_vmem >= 100 * _MIB:          # v5e / v6e: 128 MiB physical VMEM
        budget, limit_cap, tile_m_cap = 96 * _MIB, 110 * _MIB, 1024
    else:                                # v7x: 64 MiB physical per TensorCore
        budget, limit_cap, tile_m_cap = 46 * _MIB, 56 * _MIB, 512

    if tile_f is not None:
        assert d_ff % tile_f == 0, "tile_f must divide d_ff"

    tile_m_eff, n_m, tile_f_eff = _choose_tiles(
        m, d_model, d_ff, pack, act_isz, w_isz, wo_isz,
        tile_m, tile_f, budget, tile_m_cap, dual_tc)
    n_f = d_ff // tile_f_eff
    m_pad = n_m * tile_m_eff

    x2d = hidden_states.reshape(m, d_model)
    if m_pad != m:
        x2d = jnp.pad(x2d, ((0, m_pad - m), (0, 0)))

    vmem_need = _working_set_bytes(tile_m_eff, tile_f_eff, d_model,
                                   act_isz, w_isz, wo_isz)
    vmem_limit = int(min(limit_cap, max(int(vmem_need * 1.25), 32 * _MIB)))

    cost = pl.CostEstimate(
        flops=6 * m_pad * d_model * d_ff,
        transcendentals=m_pad * d_ff,
        bytes_accessed=(
            m_pad * d_model * act_isz                       # X
            + m_pad * d_model * act_isz                     # output
            + n_m * (2 * d_model * d_ff * w_isz             # Wi0+Wi1 per M tile
                     + d_ff * d_model * wo_isz)             # Wo per M tile
        ),
    )

    out2d = pl.pallas_call(
        _gated_ffn_kernel,
        out_shape=jax.ShapeDtypeStruct((m_pad, d_model), dtype),
        grid_spec=pltpu.PrefetchScalarGridSpec(
            num_scalar_prefetch=0,
            grid=(n_m, n_f),
            in_specs=[
                pl.BlockSpec((tile_m_eff, d_model), lambda i, f: (i, 0)),
                pl.BlockSpec((d_model, tile_f_eff), lambda i, f: (0, f)),
                pl.BlockSpec((d_model, tile_f_eff), lambda i, f: (0, f)),
                pl.BlockSpec((tile_f_eff, d_model), lambda i, f: (f, 0)),
            ],
            out_specs=pl.BlockSpec((tile_m_eff, d_model), lambda i, f: (i, 0)),
            scratch_shapes=[pltpu.VMEM((tile_m_eff, d_model), jnp.float32)],
        ),
        compiler_params=pltpu.CompilerParams(
            dimension_semantics=("parallel", "arbitrary"),
            vmem_limit_bytes=vmem_limit,
        ),
        cost_estimate=cost,
    )(x2d, wi0, wi1, wo)

    if m_pad != m:
        out2d = out2d[:m]
    return out2d.reshape(b, s, d_model)


def _reference(hidden_states, wi0, wi1, wo):
    h_gelu = _gelu_new(hidden_states @ wi0)
    h_lin = hidden_states @ wi1
    return (h_gelu * h_lin) @ wo


if __name__ == "__main__":
    # Small, lane-aligned demo config: d_model=128, d_ff=512, batch=2, seq=8.
    batch, seq, d_model, d_ff = 2, 8, 128, 512

    key = jax.random.PRNGKey(0)
    kx, k0, k1, k2 = jax.random.split(key, 4)

    hidden_states = jax.random.normal(kx, (batch, seq, d_model), dtype=jnp.float32)
    # nn.Linear(d_model, d_ff).weight is [d_ff, d_model]; we store the transpose
    # ([d_model, d_ff]) so the kernel right-multiplies (== x @ W.T).
    wi0 = (jax.random.normal(k0, (d_model, d_ff), dtype=jnp.float32)
           / jnp.sqrt(d_model))
    wi1 = (jax.random.normal(k1, (d_model, d_ff), dtype=jnp.float32)
           / jnp.sqrt(d_model))
    wo = (jax.random.normal(k2, (d_ff, d_model), dtype=jnp.float32)
          / jnp.sqrt(d_ff))

    # 1) f32, explicit tile_f=256 (>=256 floor) -> exercises the d_ff reduction
    #    axis + f32 accumulator (n_f = 2).
    out = jax.block_until_ready(
        umt5_dense_gated_act_dense(hidden_states, wi0, wi1, wo, tile_f=256))
    ref = _reference(hidden_states, wi0, wi1, wo)
    assert out.shape == (batch, seq, d_model)
    assert jnp.allclose(out, ref, atol=1e-3, rtol=1e-3), "f32 mismatch vs reference"

    # 2) bf16 weights/activations (recommended deployment dtype), default tiling.
    xb = hidden_states.astype(jnp.bfloat16)
    w0b, w1b, wob = (w.astype(jnp.bfloat16) for w in (wi0, wi1, wo))
    out_bf16 = jax.block_until_ready(umt5_dense_gated_act_dense(xb, w0b, w1b, wob))
    ref_bf16 = _reference(xb.astype(jnp.float32), w0b.astype(jnp.float32),
                          w1b.astype(jnp.float32), wob.astype(jnp.float32))
    assert jnp.allclose(out_bf16.astype(jnp.float32), ref_bf16,
                        atol=5e-2, rtol=5e-2), "bf16 mismatch vs reference"

    # 3) Ragged M (batch*seq = 300) with explicit tile_m=128 -> multiple M tiles
    #    (n_m = 3) with minimized padding (104-row tiles, 12 pad rows).
    x3 = jax.random.normal(kx, (3, 100, d_model), dtype=jnp.float32)
    out3 = jax.block_until_ready(
        umt5_dense_gated_act_dense(x3, wi0, wi1, wo, tile_m=128))
    ref3 = _reference(x3, wi0, wi1, wo)
    assert out3.shape == (3, 100, d_model)
    assert jnp.allclose(out3, ref3, atol=1e-3, rtol=1e-3), "ragged-M mismatch"

    print("KERNEL_OK")
</pallas_src>

<mosaic_0001>
module attributes {stable_mosaic.version = 11 : i64} {
  func.func @_gated_ffn_kernel(%arg0: i32, %arg1: i32, %arg2: memref<16x128xf32, #tpu.memory_space<vmem>>, %arg3: memref<128x256xf32, #tpu.memory_space<vmem>>, %arg4: memref<128x256xf32, #tpu.memory_space<vmem>>, %arg5: memref<256x128xf32, #tpu.memory_space<vmem>>, %arg6: memref<16x128xf32, #tpu.memory_space<vmem>>, %arg7: memref<16x128xf32, #tpu.memory_space<vmem>>) attributes {dimension_semantics = [#tpu.dimension_semantics<parallel>, #tpu.dimension_semantics<arbitrary>], iteration_bounds = array<i64: 1, 2>, scalar_prefetch = 0 : i64, scratch_operands = 1 : i64, tpu.core_type = #tpu.core_type<tc>, window_params = [{transform_indices = @transform_0, window_bounds = array<i64: 16, 128>}, {transform_indices = @transform_1, window_bounds = array<i64: 128, 256>}, {transform_indices = @transform_2, window_bounds = array<i64: 128, 256>}, {transform_indices = @transform_3, window_bounds = array<i64: 256, 128>}, {transform_indices = @transform_4, window_bounds = array<i64: 16, 128>}]} {
    %c0_i32 = arith.constant 0 : i32
    %0 = arith.cmpi eq, %arg1, %c0_i32 : i32
    %1 = arith.extui %0 : i1 to i32
    %c0_i32_0 = arith.constant 0 : i32
    %2 = arith.cmpi ne, %1, %c0_i32_0 : i32
    scf.if %2 {
      %cst_19 = arith.constant 0.000000e+00 : f32
      %30 = vector.broadcast %cst_19 : f32 to vector<16x128xf32>
      %c0_20 = arith.constant 0 : index
      %c0_21 = arith.constant 0 : index
      %31 = vector.load %arg7[%c0_20, %c0_21] : memref<16x128xf32, #tpu.memory_space<vmem>>, vector<16x128xf32>
      tpu.vector_store %arg7[%c0_20, %c0_21], %30 {strides = array<i32>} : memref<16x128xf32, #tpu.memory_space<vmem>>, vector<16x128xf32>,
    } else {
    }
    %c0 = arith.constant 0 : index
    %c0_1 = arith.constant 0 : index
    %3 = vector.load %arg2[%c0, %c0_1] : memref<16x128xf32, #tpu.memory_space<vmem>>, vector<16x128xf32>
    %c0_2 = arith.constant 0 : index
    %c0_3 = arith.constant 0 : index
    %4 = vector.load %arg3[%c0_2, %c0_3] : memref<128x256xf32, #tpu.memory_space<vmem>>, vector<128x256xf32>
    %cst = arith.constant dense<0.000000e+00> : vector<16x256xf32>
    %5 = tpu.matmul %3, %4, %cst {dimension_numbers = #tpu.dot_dimension_numbers<[1], [0], [0], [1], [0, 0, 1, 1], [], []>} : vector<16x128xf32>, vector<128x256xf32>, vector<16x256xf32> -> vector<16x256xf32>
    %c0_4 = arith.constant 0 : index
    %c0_5 = arith.constant 0 : index
    %6 = vector.load %arg4[%c0_4, %c0_5] : memref<128x256xf32, #tpu.memory_space<vmem>>, vector<128x256xf32>
    %cst_6 = arith.constant dense<0.000000e+00> : vector<16x256xf32>
    %7 = tpu.matmul %3, %6, %cst_6 {dimension_numbers = #tpu.dot_dimension_numbers<[1], [0], [0], [1], [0, 0, 1, 1], [], []>} : vector<16x128xf32>, vector<128x256xf32>, vector<16x256xf32> -> vector<16x256xf32>
    %cst_7 = arith.constant 5.000000e-01 : f32
    %8 = vector.broadcast %cst_7 : f32 to vector<16x256xf32>
    %9 = arith.mulf %8, %5 : vector<16x256xf32>
    %cst_8 = arith.constant 4.471500e-02 : f32
    %10 = vector.broadcast %cst_8 : f32 to vector<16x256xf32>
    %11 = arith.mulf %10, %5 : vector<16x256xf32>
    %12 = arith.mulf %11, %5 : vector<16x256xf32>
    %13 = arith.mulf %12, %5 : vector<16x256xf32>
    %14 = arith.addf %5, %13 : vector<16x256xf32>
    %cst_9 = arith.constant 0.797884583 : f32
    %15 = vector.broadcast %cst_9 : f32 to vector<16x256xf32>
    %16 = arith.mulf %15, %14 : vector<16x256xf32>
    %17 = math.tanh %16 : vector<16x256xf32>
    %cst_10 = arith.constant 1.000000e+00 : f32
    %18 = vector.broadcast %cst_10 : f32 to vector<16x256xf32>
    %19 = arith.addf %18, %17 : vector<16x256xf32>
    %20 = arith.mulf %9, %19 : vector<16x256xf32>
    %21 = arith.mulf %20, %7 : vector<16x256xf32>
    %c0_11 = arith.constant 0 : index
    %c0_12 = arith.constant 0 : index
    %22 = vector.load %arg7[%c0_11, %c0_12] : memref<16x128xf32, #tpu.memory_space<vmem>>, vector<16x128xf32>
    %c0_13 = arith.constant 0 : index
    %c0_14 = arith.constant 0 : index
    %23 = vector.load %arg5[%c0_13, %c0_14] : memref<256x128xf32, #tpu.memory_space<vmem>>, vector<256x128xf32>
    %cst_15 = arith.constant dense<0.000000e+00> : vector<16x128xf32>
    %24 = tpu.matmul %21, %23, %cst_15 {dimension_numbers = #tpu.dot_dimension_numbers<[1], [0], [0], [1], [0, 0, 1, 1], [], []>} : vector<16x256xf32>, vector<256x128xf32>, vector<16x128xf32> -> vector<16x128xf32>
    %25 = arith.addf %22, %24 : vector<16x128xf32>
    %c0_16 = arith.constant 0 : index
    %c0_17 = arith.constant 0 : index
    %26 = vector.load %arg7[%c0_16, %c0_17] : memref<16x128xf32, #tpu.memory_space<vmem>>, vector<16x128xf32>
    tpu.vector_store %arg7[%c0_16, %c0_17], %25 {strides = array<i32>} : memref<16x128xf32, #tpu.memory_space<vmem>>, vector<16x128xf32>,
    %c1_i32 = arith.constant 1 : i32
    %27 = arith.cmpi eq, %arg1, %c1_i32 : i32
    %28 = arith.extui %27 : i1 to i32
    %c0_i32_18 = arith.constant 0 : i32
    %29 = arith.cmpi ne, %28, %c0_i32_18 : i32
    scf.if %29 {
      %c0_19 = arith.constant 0 : index
      %c0_20 = arith.constant 0 : index
      %30 = vector.load %arg7[%c0_19, %c0_20] : memref<16x128xf32, #tpu.memory_space<vmem>>, vector<16x128xf32>
      %c0_21 = arith.constant 0 : index
      %c0_22 = arith.constant 0 : index
      %31 = vector.load %arg6[%c0_21, %c0_22] : memref<16x128xf32, #tpu.memory_space<vmem>>, vector<16x128xf32>
      tpu.vector_store %arg6[%c0_21, %c0_22], %30 {strides = array<i32>} : memref<16x128xf32, #tpu.memory_space<vmem>>, vector<16x128xf32>,
    } else {
    }
    return
  }
  func.func @transform_0(%arg0: i32, %arg1: i32) -> (i32, i32) {
    %c0_i32 = arith.constant 0 : i32
    %c0_i32_0 = arith.constant 0 : i32
    return %arg0, %c0_i32 : i32, i32
  }
  func.func @transform_1(%arg0: i32, %arg1: i32) -> (i32, i32) {
    %c0_i32 = arith.constant 0 : i32
    %c0_i32_0 = arith.constant 0 : i32
    return %c0_i32, %arg1 : i32, i32
  }
  func.func @transform_2(%arg0: i32, %arg1: i32) -> (i32, i32) {
    %c0_i32 = arith.constant 0 : i32
    %c0_i32_0 = arith.constant 0 : i32
    return %c0_i32, %arg1 : i32, i32
  }
  func.func @transform_3(%arg0: i32, %arg1: i32) -> (i32, i32) {
    %c0_i32 = arith.constant 0 : i32
    %c0_i32_0 = arith.constant 0 : i32
    return %arg1, %c0_i32 : i32, i32
  }
  func.func @transform_4(%arg0: i32, %arg1: i32) -> (i32, i32) {
    %c0_i32 = arith.constant 0 : i32
    %c0_i32_0 = arith.constant 0 : i32
    return %arg0, %c0_i32 : i32, i32
  }
}

</mosaic_0001>

<llo_original>
// kernel: umt5_dense_gated_act_dense.1
$region0: #{umt5_dense_gated_act_dense.1}
  #allocation0 [shape = 'u32[]', space=smem, size = 0x4, offset = 0x4, fixed_abs, tag = 'smem constant byte address 0x4 - core index']
  #allocation1 [shape = 'u32[144,128]{1,0:T(1,128)}', space=vmem, size = 0x12000, scoped, tag = 'internal scratch']
  #allocation2 [shape = 'f32[16,128]{1,0:T(8,128)}', space=vmem, size = 0x2000, scoped, tag = 'scratch operand']
  %s0 = inlined_call_operand.hbm [shape: f32[16,128], index: 0, kind: input, shape index: {}]
  %s1 = inlined_call_operand.hbm [shape: f32[128,512], index: 1, kind: input, shape index: {}]
  %s2 = inlined_call_operand.hbm [shape: f32[128,512], index: 2, kind: input, shape index: {}]
  %s3 = inlined_call_operand.hbm [shape: f32[512,128], index: 3, kind: input, shape index: {}]
  %s4 = inlined_call_operand.hbm [shape: f32[16,128], index: 4, kind: output, shape index: {}]
  %s5 = sld [smem:[#allocation0]]
  $region73: #{umt5_dense_gated_act_dense.1} parent=0
    _
  %s7 = ssub.s32 1, %s5
  %s8 = scalar_select 0, %s7, %s5
  $region1: #{umt5_dense_gated_act_dense.1} parent=0
    #allocation3 [shape = 'u8[8192]{0}', space=vmem, size = 0x2000, scoped, tag = 'input window, operand 0, single buffered']
    #allocation4 [shape = 's32[2]{0}', space=sflag, size = 0x8, scoped, tag = 'scoped memory for umt5_dense_gated_act_dense.1']
    #allocation5 [shape = 's32[2]{0}', space=sflag, size = 0x8, scoped, tag = 'scoped memory for umt5_dense_gated_act_dense.1']
    #allocation6 [shape = 'u8[262144]{0}', space=vmem, size = 0x40000, scoped, tag = 'input window, operand 1']
    #allocation7 [shape = 's32[2]{0}', space=sflag, size = 0x8, scoped, tag = 'scoped memory for umt5_dense_gated_act_dense.1']
    #allocation8 [shape = 'u8[262144]{0}', space=vmem, size = 0x40000, scoped, tag = 'input window, operand 2']
    #allocation9 [shape = 'u8[262144]{0}', space=vmem, size = 0x40000, scoped, tag = 'input window, operand 3']
    #allocation10 [shape = 's32[2]{0}', space=sflag, size = 0x8, scoped, tag = 'scoped memory for umt5_dense_gated_act_dense.1']
    #allocation11 [shape = 'u8[8192]{0}', space=vmem, size = 0x2000, scoped, tag = 'output window, operand 0, single buffered']
    %9 = vsyncpa [#allocation4], 0
    %10 = vsyncpa [#allocation7], 0
    %s11 = scalar_lea.sflag [#allocation7], 1
    %12 = vsyncpa %s11, 0
    %13 = vsyncpa [#allocation10], 0
    %s14 = scalar_lea.sflag [#allocation10], 1
    %15 = vsyncpa %s14, 0
    %16 = vsyncpa [#allocation5], 0
    loop: start=0, step=1, limit=4
    $region2: #{umt5_dense_gated_act_dense.1} parent=1 // loop_pre_header
      _
    $region3: #{umt5_dense_gated_act_dense.1} parent=1 // loop_header
      %s18 = sphi 0, %s22
      %p19 = scmp.ge.s32.totalorder %s18, 4
      %s25 = sphi 0, %s37
      %s26 = sphi 0, %s33
      %s27 = sphi 0, %s25
      %s28 = sphi 0, %s26
      %s29 = sphi 0, %s27
      %s30 = sphi 0, %s28
      %s40 = sphi 0, %s42
      %s43 = sphi 0, %s40
      %s44 = sphi 0, %s43
      %s60 = sphi 0, %s44
      %s66 = sphi 0, %s68
      %s69 = sphi 0, %s66
      %s70 = sphi 0, %s69
      %s86 = sphi 0, %s70
      %s92 = sphi 0, %s94
      %s95 = sphi 0, %s92
      %s96 = sphi 0, %s95
      %s112 = sphi 0, %s96
      %s118 = sphi 0, %s120
      %s121 = sphi 0, %s118
      %s122 = sphi 0, %s121
      %s138 = sphi 0, %s122
      %s144 = sphi 0, %s146
      %s147 = sphi 0, %s144
      %s148 = sphi 0, %s147
      %s164 = sphi 0, %s148
    $region4: #{umt5_dense_gated_act_dense.1} parent=1 // loop_header_branch
      %21 = sbr.rel (%p19) target = $region8
    $region5: #{umt5_dense_gated_act_dense.1} parent=1 // loop_body
      %s23 = ssub.s32 %s18, 1
      %s24 = ssub.s32 %s18, 2
      %s31 = sadd.s32 1, %s26
      %p32 = scmp.ge.s32.totalorder %s31, 2
      %s33 = scalar_select %p32, 0, %s31
      %s34 = sadd.s32 1, %s25
      %s35 = scalar_select %p32, %s34, %s25
      %p36 = scmp.ge.s32.totalorder %s35, 1
      %s37 = scalar_select %p36, 0, %s35
      %s38 = ssub.s32 %s25, %s37
      %p39 = scmp.eq.s32.totalorder %s38, 0
      %s41 = sadd.s32 %s40, 1
      %s42 = scalar_select %p39, %s40, %s41
      %p45 = pneg %p39
      %p46 = scmp.eq.s32.totalorder %s18, 1
      %p47 = por %p45, %p46
      %p48 = scmp.ne.s32.totalorder %s40, %s43
      %p49 = scmp.eq.s32.totalorder %s18, 0
      %p50 = por %p48, %p49
      %p51 = scmp.ne.s32.totalorder %s40, %s43
      %p52 = scmp.eq.s32.totalorder %s23, 1
      %p53 = por %p51, %p52
      %p54 = scmp.ne.s32.totalorder %s43, %s44
      %p55 = scmp.eq.s32.totalorder %s23, 0
      %p56 = por %p54, %p55
      %p57 = scmp.ne.s32.totalorder %s43, %s44
      %p58 = scmp.eq.s32.totalorder %s24, 1
      %p59 = por %p57, %p58
      %p61 = scmp.ne.s32.totalorder %s44, %s60
      %p62 = scmp.eq.s32.totalorder %s24, 0
      %p63 = por %p61, %p62
      %s64 = ssub.s32 %s26, %s33
      %p65 = scmp.eq.s32.totalorder %s64, 0
      %s67 = sadd.s32 %s66, 1
      %s68 = scalar_select %p65, %s66, %s67
      %p71 = pneg %p65
      %p72 = scmp.eq.s32.totalorder %s18, 1
      %p73 = por %p71, %p72
      %p74 = scmp.ne.s32.totalorder %s66, %s69
      %p75 = scmp.eq.s32.totalorder %s18, 0
      %p76 = por %p74, %p75
      %p77 = scmp.ne.s32.totalorder %s66, %s69
      %p78 = scmp.eq.s32.totalorder %s23, 1
      %p79 = por %p77, %p78
      %p80 = scmp.ne.s32.totalorder %s69, %s70
      %p81 = scmp.eq.s32.totalorder %s23, 0
      %p82 = por %p80, %p81
      %p83 = scmp.ne.s32.totalorder %s69, %s70
      %p84 = scmp.eq.s32.totalorder %s24, 1
      %p85 = por %p83, %p84
      %p87 = scmp.ne.s32.totalorder %s70, %s86
      %p88 = scmp.eq.s32.totalorder %s24, 0
      %p89 = por %p87, %p88
      %s90 = ssub.s32 %s26, %s33
      %p91 = scmp.eq.s32.totalorder %s90, 0
      %s93 = sadd.s32 %s92, 1
      %s94 = scalar_select %p91, %s92, %s93
      %p97 = pneg %p91
      %p98 = scmp.eq.s32.totalorder %s18, 1
      %p99 = por %p97, %p98
      %p100 = scmp.ne.s32.totalorder %s92, %s95
      %p101 = scmp.eq.s32.totalorder %s18, 0
      %p102 = por %p100, %p101
      %p103 = scmp.ne.s32.totalorder %s92, %s95
      %p104 = scmp.eq.s32.totalorder %s23, 1
      %p105 = por %p103, %p104
      %p106 = scmp.ne.s32.totalorder %s95, %s96
      %p107 = scmp.eq.s32.totalorder %s23, 0
      %p108 = por %p106, %p107
      %p109 = scmp.ne.s32.totalorder %s95, %s96
      %p110 = scmp.eq.s32.totalorder %s24, 1
      %p111 = por %p109, %p110
      %p113 = scmp.ne.s32.totalorder %s96, %s112
      %p114 = scmp.eq.s32.totalorder %s24, 0
      %p115 = por %p113, %p114
      %s116 = ssub.s32 %s26, %s33
      %p117 = scmp.eq.s32.totalorder %s116, 0
      %s119 = sadd.s32 %s118, 1
      %s120 = scalar_select %p117, %s118, %s119
      %p123 = pneg %p117
      %p124 = scmp.eq.s32.totalorder %s18, 1
      %p125 = por %p123, %p124
      %p126 = scmp.ne.s32.totalorder %s118, %s121
      %p127 = scmp.eq.s32.totalorder %s18, 0
      %p128 = por %p126, %p127
      %p129 = scmp.ne.s32.totalorder %s118, %s121
      %p130 = scmp.eq.s32.totalorder %s23, 1
      %p131 = por %p129, %p130
      %p132 = scmp.ne.s32.totalorder %s121, %s122
      %p133 = scmp.eq.s32.totalorder %s23, 0
      %p134 = por %p132, %p133
      %p135 = scmp.ne.s32.totalorder %s121, %s122
      %p136 = scmp.eq.s32.totalorder %s24, 1
      %p137 = por %p135, %p136
      %p139 = scmp.ne.s32.totalorder %s122, %s138
      %p140 = scmp.eq.s32.totalorder %s24, 0
      %p141 = por %p139, %p140
      %s142 = ssub.s32 %s25, %s37
      %p143 = scmp.eq.s32.totalorder %s142, 0
      %s145 = sadd.s32 %s144, 1
      %s146 = scalar_select %p143, %s144, %s145
      %p149 = pneg %p143
      %p150 = scmp.eq.s32.totalorder %s18, 1
      %p151 = por %p149, %p150
      %p152 = scmp.ne.s32.totalorder %s144, %s147
      %p153 = scmp.eq.s32.totalorder %s18, 0
      %p154 = por %p152, %p153
      %p155 = scmp.ne.s32.totalorder %s144, %s147
      %p156 = scmp.eq.s32.totalorder %s23, 1
      %p157 = por %p155, %p156
      %p158 = scmp.ne.s32.totalorder %s147, %s148
      %p159 = scmp.eq.s32.totalorder %s23, 0
      %p160 = por %p158, %p159
      %p161 = scmp.ne.s32.totalorder %s147, %s148
      %p162 = scmp.eq.s32.totalorder %s24, 1
      %p163 = por %p161, %p162
      %p165 = scmp.ne.s32.totalorder %s148, %s164
      %p166 = scmp.eq.s32.totalorder %s24, 0
      %p167 = por %p165, %p166
      %p168 = scmp.le.s32.totalorder 1, %s18
      %p169 = scmp.lt.s32.totalorder %s18, 3
      %p170 = pnand %p168, %p169
      %p171 = pneg %p170
      // Predicated region
      $region9: #{umt5_dense_gated_act_dense.1} parent=5 // pred_check
        _
      $region10: #{umt5_dense_gated_act_dense.1} parent=5 // pred_check_branch
        %173 = sbr.rel (%p170) target = $region12
      $region11: #{umt5_dense_gated_act_dense.1} parent=5 // pred_region
        %s174 = ssub.s32 %s18, 1
        // Predicated region
        $region13: #{umt5_dense_gated_act_dense.1} parent=11 // pred_check
          %p175 = pneg %p56
        $region14: #{umt5_dense_gated_act_dense.1} parent=11 // pred_check_branch
          %177 = sbr.rel (%p175) target = $region16
        $region15: #{umt5_dense_gated_act_dense.1} parent=11 // pred_region
          %s178 = smul.u32 2, %s27
          %s180 = ssub.s32 256, 256
          %181 = vsyncadd [#allocation4], %s180
          %s182 = smul.addr %s178, 128
          %s183 = scalar_lea.hbm %s0, %s182
          %s184 = sshll.u32 [#allocation3], 4
          %s185 = int_to_ptr.vmem [resolvable:$true] %s184
          %190 = dma.hbm_to_vmem [thread:$0]  %s183, 256, %s185, [#allocation4], 128, 128, 8
        $region16: #{umt5_dense_gated_act_dense.1} parent=11 // pred_fallthru
          _
      $region12: #{umt5_dense_gated_act_dense.1} parent=5 // pred_fallthru
        _
      %p191 = scmp.lt.s32.totalorder %s18, 2
      // Predicated region
      $region17: #{umt5_dense_gated_act_dense.1} parent=5 // pred_check
        %p192 = pneg %p191
      $region18: #{umt5_dense_gated_act_dense.1} parent=5 // pred_check_branch
        %194 = sbr.rel (%p192) target = $region20
      $region19: #{umt5_dense_gated_act_dense.1} parent=5 // pred_region
        // Predicated region
        $region21: #{umt5_dense_gated_act_dense.1} parent=19 // pred_check
          %p195 = pneg %p76
        $region22: #{umt5_dense_gated_act_dense.1} parent=19 // pred_check_branch
          %197 = sbr.rel (%p195) target = $region24
        $region23: #{umt5_dense_gated_act_dense.1} parent=19 // pred_region
          %s198 = sand.u32 %s18, 1
          %s199 = scalar_lea.sflag [#allocation7], %s198
          %s200 = sand.u32 %s66, 1
          %s201 = smul.addr %s200, 256
          %s202 = scalar_lea.vmem [#allocation6], %s201
          %s203 = smul.u32 2, %s26
          %s205 = ssub.s32 4096, 4096
          %206 = vsyncadd %s199, %s205
          %s207 = smul.addr %s203, 128
          %s208 = scalar_lea.hbm %s1, %s207
          %s209 = sshll.u32 %s202, 4
          %s210 = int_to_ptr.vmem [resolvable:$true] %s209
          %215 = dma.hbm_to_vmem [thread:$0]  %s208, 4096, %s210, %s199, 512, 256, 16
        $region24: #{umt5_dense_gated_act_dense.1} parent=19 // pred_fallthru
          _
        // Predicated region
        $region25: #{umt5_dense_gated_act_dense.1} parent=19 // pred_check
          %p216 = pneg %p102
        $region26: #{umt5_dense_gated_act_dense.1} parent=19 // pred_check_branch
          %218 = sbr.rel (%p216) target = $region28
        $region27: #{umt5_dense_gated_act_dense.1} parent=19 // pred_region
          %s219 = sand.u32 %s18, 1
          %s220 = scalar_lea.sflag [#allocation7], %s219
          %s221 = sand.u32 %s92, 1
          %s222 = smul.addr %s221, 256
          %s223 = scalar_lea.vmem [#allocation8], %s222
          %s224 = smul.u32 2, %s26
          %s226 = ssub.s32 4096, 4096
          %227 = vsyncadd %s220, %s226
          %s228 = smul.addr %s224, 128
          %s229 = scalar_lea.hbm %s2, %s228
          %s230 = sshll.u32 %s223, 4
          %s231 = int_to_ptr.vmem [resolvable:$true] %s230
          %236 = dma.hbm_to_vmem [thread:$0]  %s229, 4096, %s231, %s220, 512, 256, 16
        $region28: #{umt5_dense_gated_act_dense.1} parent=19 // pred_fallthru
          _
        // Predicated region
        $region29: #{umt5_dense_gated_act_dense.1} parent=19 // pred_check
          %p237 = pneg %p128
        $region30: #{umt5_dense_gated_act_dense.1} parent=19 // pred_check_branch
          %239 = sbr.rel (%p237) target = $region32
        $region31: #{umt5_dense_gated_act_dense.1} parent=19 // pred_region
          %s240 = sand.u32 %s118, 1
          %s241 = scalar_lea.sflag [#allocation10], %s240
          %s242 = sand.u32 %s118, 1
          %s243 = smul.addr %s242, 256
          %s244 = scalar_lea.vmem [#allocation9], %s243
          %s245 = smul.u32 32, %s26
          %s247 = ssub.s32 4096, 4096
          %248 = vsyncadd %s241, %s247
          %s249 = smul.addr %s245, 128
          %s250 = scalar_lea.hbm %s3, %s249
          %s251 = sshll.u32 %s244, 4
          %s252 = int_to_ptr.vmem [resolvable:$true] %s251
          %257 = dma.hbm_to_vmem [thread:$0]  %s250, 4096, %s252, %s241, 128, 128, 8
        $region32: #{umt5_dense_gated_act_dense.1} parent=19 // pred_fallthru
          _
      $region20: #{umt5_dense_gated_act_dense.1} parent=5 // pred_fallthru
        _
      %p258 = scmp.le.s32.totalorder 1, %s18
      %p259 = scmp.lt.s32.totalorder %s18, 3
      %p260 = pnand %p258, %p259
      %p261 = pneg %p260
      // Predicated region
      $region33: #{umt5_dense_gated_act_dense.1} parent=5 // pred_check
        _
      $region34: #{umt5_dense_gated_act_dense.1} parent=5 // pred_check_branch
        %263 = sbr.rel (%p260) target = $region36
      $region35: #{umt5_dense_gated_act_dense.1} parent=5 // pred_region
        %s264 = ssub.s32 %s18, 1
        // Predicated region
        $region37: #{umt5_dense_gated_act_dense.1} parent=35 // pred_check
          %p265 = pneg %p56
        $region38: #{umt5_dense_gated_act_dense.1} parent=35 // pred_check_branch
          %267 = sbr.rel (%p265) target = $region40
        $region39: #{umt5_dense_gated_act_dense.1} parent=35 // pred_region
          %268 = dma.done [#allocation4], 256
        $region40: #{umt5_dense_gated_act_dense.1} parent=35 // pred_fallthru
          _
        %s269 = sand.u32 %s23, 1
        %s270 = scalar_lea.sflag [#allocation7], %s269
        %s271 = sand.u32 %s69, 1
        %s272 = smul.addr %s271, 256
        %s273 = scalar_lea.vmem [#allocation6], %s272
        // Predicated region
        $region41: #{umt5_dense_gated_act_dense.1} parent=35 // pred_check
          %p274 = pneg %p82
        $region42: #{umt5_dense_gated_act_dense.1} parent=35 // pred_check_branch
          %276 = sbr.rel (%p274) target = $region44
        $region43: #{umt5_dense_gated_act_dense.1} parent=35 // pred_region
          %277 = dma.done %s270, 4096
        $region44: #{umt5_dense_gated_act_dense.1} parent=35 // pred_fallthru
          _
        %s278 = sand.u32 %s23, 1
        %s279 = scalar_lea.sflag [#allocation7], %s278
        %s280 = sand.u32 %s95, 1
        %s281 = smul.addr %s280, 256
        %s282 = scalar_lea.vmem [#allocation8], %s281
        // Predicated region
        $region45: #{umt5_dense_gated_act_dense.1} parent=35 // pred_check
          %p283 = pneg %p108
        $region46: #{umt5_dense_gated_act_dense.1} parent=35 // pred_check_branch
          %285 = sbr.rel (%p283) target = $region48
        $region47: #{umt5_dense_gated_act_dense.1} parent=35 // pred_region
          %286 = dma.done %s279, 4096
        $region48: #{umt5_dense_gated_act_dense.1} parent=35 // pred_fallthru
          _
        %s287 = sand.u32 %s121, 1
        %s288 = scalar_lea.sflag [#allocation10], %s287
        %s289 = sand.u32 %s121, 1
        %s290 = smul.addr %s289, 256
        %s291 = scalar_lea.vmem [#allocation9], %s290
        // Predicated region
        $region49: #{umt5_dense_gated_act_dense.1} parent=35 // pred_check
          %p292 = pneg %p134
        $region50: #{umt5_dense_gated_act_dense.1} parent=35 // pred_check_branch
          %294 = sbr.rel (%p292) target = $region52
        $region51: #{umt5_dense_gated_act_dense.1} parent=35 // pred_region
          %295 = dma.done %s288, 4096
        $region52: #{umt5_dense_gated_act_dense.1} parent=35 // pred_fallthru
          _
        %p296 = pneg %p56
        %p297 = pneg %p53
        %s298 = sand.u32 %s23, 1
        %s299 = scalar_lea.sflag [#allocation7], %s298
        %s300 = sand.u32 %s69, 1
        %s301 = smul.addr %s300, 256
        %s302 = scalar_lea.vmem [#allocation6], %s301
        %p303 = pneg %p82
        %p304 = pneg %p79
        %s305 = sand.u32 %s23, 1
        %s306 = scalar_lea.sflag [#allocation7], %s305
        %s307 = sand.u32 %s95, 1
        %s308 = smul.addr %s307, 256
        %s309 = scalar_lea.vmem [#allocation8], %s308
        %p310 = pneg %p108
        %p311 = pneg %p105
        %s312 = sand.u32 %s121, 1
        %s313 = scalar_lea.sflag [#allocation10], %s312
        %s314 = sand.u32 %s121, 1
        %s315 = smul.addr %s314, 256
        %s316 = scalar_lea.vmem [#allocation9], %s315
        %p317 = pneg %p134
        %p318 = pneg %p131
        %p319 = pneg %p160
        %p320 = pneg %p157
        %s321 = smul.u32 2, %s27
        %s322 = smul.u32 2, %s28
        %s323 = smul.u32 2, %s28
        %s324 = smul.u32 32, %s28
        %s325 = smul.u32 2, %s27
        %p326 = scmp.eq.s32.totalorder %s28, 0
        // Predicated region
        $region53: #{umt5_dense_gated_act_dense.1} parent=35 // pred_check
          %p327 = pneg %p326
        $region54: #{umt5_dense_gated_act_dense.1} parent=35 // pred_check_branch
          %329 = sbr.rel (%p327) target = $region56
        $region55: #{umt5_dense_gated_act_dense.1} parent=35 // pred_region
          %330 = vst [vmem:[#allocation2] sm:$0xff] 0.0
          %331 = vst [vmem:[#allocation2 + $0x8] sm:$0xff] 0.0
        $region56: #{umt5_dense_gated_act_dense.1} parent=35 // pred_fallthru
          _
        %v332 = vld [vmem:[#allocation3] sm:$0xff]
        %v333 = vld [vmem:[#allocation3 + $0x8] sm:$0xff]
        %v334 = vld [vmem:[%s273] sm:$0xff]
        %v335 = vld [vmem:[%s273 + $0x8] sm:$0xff]
        %v336 = vld [vmem:[%s273 + $0x10] sm:$0xff]
        %v337 = vld [vmem:[%s273 + $0x18] sm:$0xff]
        %v338 = vld [vmem:[%s273 + $0x20] sm:$0xff]
        %v339 = vld [vmem:[%s273 + $0x28] sm:$0xff]
        %v340 = vld [vmem:[%s273 + $0x30] sm:$0xff]
        %v341 = vld [vmem:[%s273 + $0x38] sm:$0xff]
        %v342 = vld [vmem:[%s273 + $0x40] sm:$0xff]
        %v343 = vld [vmem:[%s273 + $0x48] sm:$0xff]
        %v344 = vld [vmem:[%s273 + $0x50] sm:$0xff]
        %v345 = vld [vmem:[%s273 + $0x58] sm:$0xff]
        %v346 = vld [vmem:[%s273 + $0x60] sm:$0xff]
        %v347 = vld [vmem:[%s273 + $0x68] sm:$0xff]
        %v348 = vld [vmem:[%s273 + $0x70] sm:$0xff]
        %v349 = vld [vmem:[%s273 + $0x78] sm:$0xff]
        %v350 = vld [vmem:[%s273 + $0x80] sm:$0xff]
        %v351 = vld [vmem:[%s273 + $0x88] sm:$0xff]
        %v352 = vld [vmem:[%s273 + $0x90] sm:$0xff]
        %v353 = vld [vmem:[%s273 + $0x98] sm:$0xff]
        %v354 = vld [vmem:[%s273 + $0xa0] sm:$0xff]
        %v355 = vld [vmem:[%s273 + $0xa8] sm:$0xff]
        %v356 = vld [vmem:[%s273 + $0xb0] sm:$0xff]
        %v357 = vld [vmem:[%s273 + $0xb8] sm:$0xff]
        %v358 = vld [vmem:[%s273 + $0xc0] sm:$0xff]
        %v359 = vld [vmem:[%s273 + $0xc8] sm:$0xff]
        %v360 = vld [vmem:[%s273 + $0xd0] sm:$0xff]
        %v361 = vld [vmem:[%s273 + $0xd8] sm:$0xff]
        %v362 = vld [vmem:[%s273 + $0xe0] sm:$0xff]
        %v363 = vld [vmem:[%s273 + $0xe8] sm:$0xff]
        %v364 = vld [vmem:[%s273 + $0xf0] sm:$0xff]
        %v365 = vld [vmem:[%s273 + $0xf8] sm:$0xff]
        %366 = vmatprep.subr.mxu0 %v335
        %367 = vmatpush1.msra.mxu0 %v334
        %368 = vmatprep.subr.mxu0 %v337
        %369 = vmatpush1.msra.mxu0 %v336
        %370 = vmatprep.subr.mxu0 %v339
        %371 = vmatpush1.msra.mxu0 %v338
        %372 = vmatprep.subr.mxu0 %v341
        %373 = vmatpush1.msra.mxu0 %v340
        %374 = vmatprep.subr.mxu0 %v343
        %375 = vmatpush1.msra.mxu0 %v342
        %376 = vmatprep.subr.mxu0 %v345
        %377 = vmatpush1.msra.mxu0 %v344
        %378 = vmatprep.subr.mxu0 %v347
        %379 = vmatpush1.msra.mxu0 %v346
        %380 = vmatprep.subr.mxu0 %v349
        %381 = vmatpush1.msra.mxu0 %v348
        %382 = vmatprep.subr.mxu0 %v351
        %383 = vmatpush1.msra.mxu0 %v350
        %384 = vmatprep.subr.mxu0 %v353
        %385 = vmatpush1.msra.mxu0 %v352
        %386 = vmatprep.subr.mxu0 %v355
        %387 = vmatpush1.msra.mxu0 %v354
        %388 = vmatprep.subr.mxu0 %v357
        %389 = vmatpush1.msra.mxu0 %v356
        %390 = vmatprep.subr.mxu0 %v359
        %391 = vmatpush1.msra.mxu0 %v358
        %392 = vmatprep.subr.mxu0 %v361
        %393 = vmatpush1.msra.mxu0 %v360
        %394 = vmatprep.subr.mxu0 %v363
        %395 = vmatpush1.msra.mxu0 %v362
        %396 = vmatprep.subr.mxu0 %v365
        %397 = vmatpush1.msra.mxu0 %v364
        %398 = vmatprep.subr.mxu0 0.0
        %399 = vmatpush1.msra.mxu0 0.0
        %400 = vmatprep.subr.mxu0 0.0
        %401 = vmatpush1.msra.mxu0 0.0
        %402 = vmatprep.subr.mxu0 0.0
        %403 = vmatpush1.msra.mxu0 0.0
        %404 = vmatprep.subr.mxu0 0.0
        %405 = vmatpush1.msra.mxu0 0.0
        %406 = vmatprep.subr.mxu0 0.0
        %407 = vmatpush1.msra.mxu0 0.0
        %408 = vmatprep.subr.mxu0 0.0
        %409 = vmatpush1.msra.mxu0 0.0
        %410 = vmatprep.subr.mxu0 0.0
        %411 = vmatpush1.msra.mxu0 0.0
        %412 = vmatprep.subr.mxu0 0.0
        %413 = vmatpush1.msra.mxu0 0.0
        %414 = vmatprep.subr.mxu0 0.0
        %415 = vmatpush1.msra.mxu0 0.0
        %416 = vmatprep.subr.mxu0 0.0
        %417 = vmatpush1.msra.mxu0 0.0
        %418 = vmatprep.subr.mxu0 0.0
        %419 = vmatpush1.msra.mxu0 0.0
        %420 = vmatprep.subr.mxu0 0.0
        %421 = vmatpush1.msra.mxu0 0.0
        %422 = vmatprep.subr.mxu0 0.0
        %423 = vmatpush1.msra.mxu0 0.0
        %424 = vmatprep.subr.mxu0 0.0
        %425 = vmatpush1.msra.mxu0 0.0
        %426 = vmatprep.subr.mxu0 0.0
        %427 = vmatpush1.msra.mxu0 0.0
        %428 = vmatprep.subr.mxu0 0.0
        %429 = vmatpush1.msra.mxu0 0.0
        %430 = vmatprep.mubr.f32.mxu0 0.0
        %431 = vmatmul.mubr.f32.gmra.mrb[0].mxu0 %v332
        %v432 = vpop.f32.mrb[0].mxu0
        %v433 = vadd.f32 0.0, %v432
        %v434 = vpop.f32.mrb[0].mxu0
        %v435 = vadd.f32 0.0, %v434
        %436 = vmatprep.mubr.f32.mxu0 0.0
        %437 = vmatmul.mubr.f32.gmra.mrb[0].mxu0 %v333
        %v438 = vpop.f32.mrb[0].mxu0
        %v439 = vadd.f32 0.0, %v438
        %v440 = vpop.f32.mrb[0].mxu0
        %v441 = vadd.f32 0.0, %v440
        %442 = vdwg.mxu0
        %v443 = vld [vmem:[%s282] sm:$0xff]
        %v444 = vld [vmem:[%s282 + $0x8] sm:$0xff]
        %v445 = vld [vmem:[%s282 + $0x10] sm:$0xff]
        %v446 = vld [vmem:[%s282 + $0x18] sm:$0xff]
        %v447 = vld [vmem:[%s282 + $0x20] sm:$0xff]
        %v448 = vld [vmem:[%s282 + $0x28] sm:$0xff]
        %v449 = vld [vmem:[%s282 + $0x30] sm:$0xff]
        %v450 = vld [vmem:[%s282 + $0x38] sm:$0xff]
        %v451 = vld [vmem:[%s282 + $0x40] sm:$0xff]
        %v452 = vld [vmem:[%s282 + $0x48] sm:$0xff]
        %v453 = vld [vmem:[%s282 + $0x50] sm:$0xff]
        %v454 = vld [vmem:[%s282 + $0x58] sm:$0xff]
        %v455 = vld [vmem:[%s282 + $0x60] sm:$0xff]
        %v456 = vld [vmem:[%s282 + $0x68] sm:$0xff]
        %v457 = vld [vmem:[%s282 + $0x70] sm:$0xff]
        %v458 = vld [vmem:[%s282 + $0x78] sm:$0xff]
        %v459 = vld [vmem:[%s282 + $0x80] sm:$0xff]
        %v460 = vld [vmem:[%s282 + $0x88] sm:$0xff]
        %v461 = vld [vmem:[%s282 + $0x90] sm:$0xff]
        %v462 = vld [vmem:[%s282 + $0x98] sm:$0xff]
        %v463 = vld [vmem:[%s282 + $0xa0] sm:$0xff]
        %v464 = vld [vmem:[%s282 + $0xa8] sm:$0xff]
        %v465 = vld [vmem:[%s282 + $0xb0] sm:$0xff]
        %v466 = vld [vmem:[%s282 + $0xb8] sm:$0xff]
        %v467 = vld [vmem:[%s282 + $0xc0] sm:$0xff]
        %v468 = vld [vmem:[%s282 + $0xc8] sm:$0xff]
        %v469 = vld [vmem:[%s282 + $0xd0] sm:$0xff]
        %v470 = vld [vmem:[%s282 + $0xd8] sm:$0xff]
        %v471 = vld [vmem:[%s282 + $0xe0] sm:$0xff]
        %v472 = vld [vmem:[%s282 + $0xe8] sm:$0xff]
        %v473 = vld [vmem:[%s282 + $0xf0] sm:$0xff]
        %v474 = vld [vmem:[%s282 + $0xf8] sm:$0xff]
        %475 = vmatprep.subr.mxu0 %v444
        %476 = vmatpush1.msra.mxu0 %v443
        %477 = vmatprep.subr.mxu0 %v446
        %478 = vmatpush1.msra.mxu0 %v445
        %479 = vmatprep.subr.mxu0 %v448
        %480 = vmatpush1.msra.mxu0 %v447
        %481 = vmatprep.subr.mxu0 %v450
        %482 = vmatpush1.msra.mxu0 %v449
        %483 = vmatprep.subr.mxu0 %v452
        %484 = vmatpush1.msra.mxu0 %v451
        %485 = vmatprep.subr.mxu0 %v454
        %486 = vmatpush1.msra.mxu0 %v453
        %487 = vmatprep.subr.mxu0 %v456
        %488 = vmatpush1.msra.mxu0 %v455
        %489 = vmatprep.subr.mxu0 %v458
        %490 = vmatpush1.msra.mxu0 %v457
        %491 = vmatprep.subr.mxu0 %v460
        %492 = vmatpush1.msra.mxu0 %v459
        %493 = vmatprep.subr.mxu0 %v462
        %494 = vmatpush1.msra.mxu0 %v461
        %495 = vmatprep.subr.mxu0 %v464
        %496 = vmatpush1.msra.mxu0 %v463
        %497 = vmatprep.subr.mxu0 %v466
        %498 = vmatpush1.msra.mxu0 %v465
        %499 = vmatprep.subr.mxu0 %v468
        %500 = vmatpush1.msra.mxu0 %v467
        %501 = vmatprep.subr.mxu0 %v470
        %502 = vmatpush1.msra.mxu0 %v469
        %503 = vmatprep.subr.mxu0 %v472
        %504 = vmatpush1.msra.mxu0 %v471
        %505 = vmatprep.subr.mxu0 %v474
        %506 = vmatpush1.msra.mxu0 %v473
        %507 = vmatprep.subr.mxu0 0.0
        %508 = vmatpush1.msra.mxu0 0.0
        %509 = vmatprep.subr.mxu0 0.0
        %510 = vmatpush1.msra.mxu0 0.0
        %511 = vmatprep.subr.mxu0 0.0
        %512 = vmatpush1.msra.mxu0 0.0
        %513 = vmatprep.subr.mxu0 0.0
        %514 = vmatpush1.msra.mxu0 0.0
        %515 = vmatprep.subr.mxu0 0.0
        %516 = vmatpush1.msra.mxu0 0.0
        %517 = vmatprep.subr.mxu0 0.0
        %518 = vmatpush1.msra.mxu0 0.0
        %519 = vmatprep.subr.mxu0 0.0
        %520 = vmatpush1.msra.mxu0 0.0
        %521 = vmatprep.subr.mxu0 0.0
        %522 = vmatpush1.msra.mxu0 0.0
        %523 = vmatprep.subr.mxu0 0.0
        %524 = vmatpush1.msra.mxu0 0.0
        %525 = vmatprep.subr.mxu0 0.0
        %526 = vmatpush1.msra.mxu0 0.0
        %527 = vmatprep.subr.mxu0 0.0
        %528 = vmatpush1.msra.mxu0 0.0
        %529 = vmatprep.subr.mxu0 0.0
        %530 = vmatpush1.msra.mxu0 0.0
        %531 = vmatprep.subr.mxu0 0.0
        %532 = vmatpush1.msra.mxu0 0.0
        %533 = vmatprep.subr.mxu0 0.0
        %534 = vmatpush1.msra.mxu0 0.0
        %535 = vmatprep.subr.mxu0 0.0
        %536 = vmatpush1.msra.mxu0 0.0
        %537 = vmatprep.subr.mxu0 0.0
        %538 = vmatpush1.msra.mxu0 0.0
        %539 = vmatprep.mubr.f32.mxu0 0.0
        %540 = vmatmul.mubr.f32.gmra.mrb[0].mxu0 %v332
        %v541 = vpop.f32.mrb[0].mxu0
        %v542 = vadd.f32 0.0, %v541
        %v543 = vpop.f32.mrb[0].mxu0
        %v544 = vadd.f32 0.0, %v543
        %545 = vmatprep.mubr.f32.mxu0 0.0
        %546 = vmatmul.mubr.f32.gmra.mrb[0].mxu0 %v333
        %v547 = vpop.f32.mrb[0].mxu0
        %v548 = vadd.f32 0.0, %v547
        %v549 = vpop.f32.mrb[0].mxu0
        %v550 = vadd.f32 0.0, %v549
        %551 = vdwg.mxu0
        %v552 = vmul.f32 %v433, 0.5
        %v553 = vmul.f32 %v435, 0.5
        %v554 = vmul.f32 %v439, 0.5
        %v555 = vmul.f32 %v441, 0.5
        %v556 = vmul.f32 %v433, 0.044715
        %v557 = vmul.f32 %v435, 0.044715
        %v558 = vmul.f32 %v439, 0.044715
        %v559 = vmul.f32 %v441, 0.044715
        %v560 = vmul.f32 %v556, %v433
        %v561 = vmul.f32 %v557, %v435
        %v562 = vmul.f32 %v558, %v439
        %v563 = vmul.f32 %v559, %v441
        %v564 = vmul.f32 %v560, %v433
        %v565 = vmul.f32 %v561, %v435
        %v566 = vmul.f32 %v562, %v439
        %v567 = vmul.f32 %v563, %v441
        %v568 = vadd.f32 %v433, %v564
        %v569 = vadd.f32 %v435, %v565
        %v570 = vadd.f32 %v439, %v566
        %v571 = vadd.f32 %v441, %v567
        %v572 = vmul.f32 %v568, 0.7978846
        %v573 = vmul.f32 %v569, 0.7978846
        %v574 = vmul.f32 %v570, 0.7978846
        %v575 = vmul.f32 %v571, 0.7978846
        %v576 = vtanh.pop %v572
        %v577 = vtanh.pop %v573
        %v578 = vtanh.pop %v574
        %v579 = vtanh.pop %v575
        %v580 = vadd.f32 %v576, 1.0
        %v581 = vadd.f32 %v577, 1.0
        %v582 = vadd.f32 %v578, 1.0
        %v583 = vadd.f32 %v579, 1.0
        %v584 = vmul.f32 %v552, %v580
        %v585 = vmul.f32 %v553, %v581
        %v586 = vmul.f32 %v554, %v582
        %v587 = vmul.f32 %v555, %v583
        %v588 = vmul.f32 %v584, %v542
        %v589 = vmul.f32 %v585, %v544
        %v590 = vmul.f32 %v586, %v548
        %v591 = vmul.f32 %v587, %v550
        %v592 = vld [vmem:[#allocation2] sm:$0xff]
        %v593 = vld [vmem:[#allocation2 + $0x8] sm:$0xff]
        %v594 = vld [vmem:[%s291] sm:$0xff]
        %v595 = vld [vmem:[%s291 + $0x8] sm:$0xff]
        %v596 = vld [vmem:[%s291 + $0x10] sm:$0xff]
        %v597 = vld [vmem:[%s291 + $0x18] sm:$0xff]
        %v598 = vld [vmem:[%s291 + $0x20] sm:$0xff]
        %v599 = vld [vmem:[%s291 + $0x28] sm:$0xff]
        %v600 = vld [vmem:[%s291 + $0x30] sm:$0xff]
        %v601 = vld [vmem:[%s291 + $0x38] sm:$0xff]
        %v602 = vld [vmem:[%s291 + $0x40] sm:$0xff]
        %v603 = vld [vmem:[%s291 + $0x48] sm:$0xff]
        %v604 = vld [vmem:[%s291 + $0x50] sm:$0xff]
        %v605 = vld [vmem:[%s291 + $0x58] sm:$0xff]
        %v606 = vld [vmem:[%s291 + $0x60] sm:$0xff]
        %v607 = vld [vmem:[%s291 + $0x68] sm:$0xff]
        %v608 = vld [vmem:[%s291 + $0x70] sm:$0xff]
        %v609 = vld [vmem:[%s291 + $0x78] sm:$0xff]
        %v610 = vld [vmem:[%s291 + $0x80] sm:$0xff]
        %v611 = vld [vmem:[%s291 + $0x88] sm:$0xff]
        %v612 = vld [vmem:[%s291 + $0x90] sm:$0xff]
        %v613 = vld [vmem:[%s291 + $0x98] sm:$0xff]
        %v614 = vld [vmem:[%s291 + $0xa0] sm:$0xff]
        %v615 = vld [vmem:[%s291 + $0xa8] sm:$0xff]
        %v616 = vld [vmem:[%s291 + $0xb0] sm:$0xff]
        %v617 = vld [vmem:[%s291 + $0xb8] sm:$0xff]
        %v618 = vld [vmem:[%s291 + $0xc0] sm:$0xff]
        %v619 = vld [vmem:[%s291 + $0xc8] sm:$0xff]
        %v620 = vld [vmem:[%s291 + $0xd0] sm:$0xff]
        %v621 = vld [vmem:[%s291 + $0xd8] sm:$0xff]
        %v622 = vld [vmem:[%s291 + $0xe0] sm:$0xff]
        %v623 = vld [vmem:[%s291 + $0xe8] sm:$0xff]
        %v624 = vld [vmem:[%s291 + $0xf0] sm:$0xff]
        %v625 = vld [vmem:[%s291 + $0xf8] sm:$0xff]
        %626 = vmatprep.subr.mxu0 0.0
        %627 = vmatpush1.msra.mxu0 %v594
        %628 = vmatprep.subr.mxu0 0.0
        %629 = vmatpush1.msra.mxu0 %v595
        %630 = vmatprep.subr.mxu0 0.0
        %631 = vmatpush1.msra.mxu0 %v596
        %632 = vmatprep.subr.mxu0 0.0
        %633 = vmatpush1.msra.mxu0 %v597
        %634 = vmatprep.subr.mxu0 0.0
        %635 = vmatpush1.msra.mxu0 %v598
        %636 = vmatprep.subr.mxu0 0.0
        %637 = vmatpush1.msra.mxu0 %v599
        %638 = vmatprep.subr.mxu0 0.0
        %639 = vmatpush1.msra.mxu0 %v600
        %640 = vmatprep.subr.mxu0 0.0
        %641 = vmatpush1.msra.mxu0 %v601
        %642 = vmatprep.subr.mxu0 0.0
        %643 = vmatpush1.msra.mxu0 %v602
        %644 = vmatprep.subr.mxu0 0.0
        %645 = vmatpush1.msra.mxu0 %v603
        %646 = vmatprep.subr.mxu0 0.0
        %647 = vmatpush1.msra.mxu0 %v604
        %648 = vmatprep.subr.mxu0 0.0
        %649 = vmatpush1.msra.mxu0 %v605
        %650 = vmatprep.subr.mxu0 0.0
        %651 = vmatpush1.msra.mxu0 %v606
        %652 = vmatprep.subr.mxu0 0.0
        %653 = vmatpush1.msra.mxu0 %v607
        %654 = vmatprep.subr.mxu0 0.0
        %655 = vmatpush1.msra.mxu0 %v608
        %656 = vmatprep.subr.mxu0 0.0
        %657 = vmatpush1.msra.mxu0 %v609
        %658 = vmatprep.subr.mxu0 0.0
        %659 = vmatpush1.msra.mxu0 %v610
        %660 = vmatprep.subr.mxu0 0.0
        %661 = vmatpush1.msra.mxu0 %v611
        %662 = vmatprep.subr.mxu0 0.0
        %663 = vmatpush1.msra.mxu0 %v612
        %664 = vmatprep.subr.mxu0 0.0
        %665 = vmatpush1.msra.mxu0 %v613
        %666 = vmatprep.subr.mxu0 0.0
        %667 = vmatpush1.msra.mxu0 %v614
        %668 = vmatprep.subr.mxu0 0.0
        %669 = vmatpush1.msra.mxu0 %v615
        %670 = vmatprep.subr.mxu0 0.0
        %671 = vmatpush1.msra.mxu0 %v616
        %672 = vmatprep.subr.mxu0 0.0
        %673 = vmatpush1.msra.mxu0 %v617
        %674 = vmatprep.subr.mxu0 0.0
        %675 = vmatpush1.msra.mxu0 %v618
        %676 = vmatprep.subr.mxu0 0.0
        %677 = vmatpush1.msra.mxu0 %v619
        %678 = vmatprep.subr.mxu0 0.0
        %679 = vmatpush1.msra.mxu0 %v620
        %680 = vmatprep.subr.mxu0 0.0
        %681 = vmatpush1.msra.mxu0 %v621
        %682 = vmatprep.subr.mxu0 0.0
        %683 = vmatpush1.msra.mxu0 %v622
        %684 = vmatprep.subr.mxu0 0.0
        %685 = vmatpush1.msra.mxu0 %v623
        %686 = vmatprep.subr.mxu0 0.0
        %687 = vmatpush1.msra.mxu0 %v624
        %688 = vmatprep.subr.mxu0 0.0
        %689 = vmatpush1.msra.mxu0 %v625
        %690 = vmatprep.mubr.f32.mxu0 %v589
        %691 = vmatmul.mubr.f32.gmra.mrb[0].mxu0 %v588
        %v692 = vpop.f32.mrb[0].mxu0
        %v693 = vadd.f32 0.0, %v692
        %v694 = vpop.f32.mrb[0].mxu0
        %695 = vmatprep.mubr.f32.mxu0 %v591
        %696 = vmatmul.mubr.f32.gmra.mrb[0].mxu0 %v590
        %v697 = vpop.f32.mrb[0].mxu0
        %v698 = vadd.f32 0.0, %v697
        %v699 = vpop.f32.mrb[0].mxu0
        %700 = vdwg.mxu0
        %v701 = vadd.f32 %v592, %v693
        %v702 = vadd.f32 %v593, %v698
        %703 = vst [vmem:[#allocation2] sm:$0xff] %v701
        %704 = vst [vmem:[#allocation2 + $0x8] sm:$0xff] %v702
        %p705 = scmp.eq.s32.totalorder %s28, 1
        // Predicated region
        $region57: #{umt5_dense_gated_act_dense.1} parent=35 // pred_check
          %p706 = pneg %p705
        $region58: #{umt5_dense_gated_act_dense.1} parent=35 // pred_check_branch
          %708 = sbr.rel (%p706) target = $region60
        $region59: #{umt5_dense_gated_act_dense.1} parent=35 // pred_region
          %v709 = vld [vmem:[#allocation2] sm:$0xff]
          %v710 = vld [vmem:[#allocation2 + $0x8] sm:$0xff]
          %711 = vst [vmem:[#allocation11] sm:$0xff] %v709
          %712 = vst [vmem:[#allocation11 + $0x8] sm:$0xff] %v710
        $region60: #{umt5_dense_gated_act_dense.1} parent=35 // pred_fallthru
          _
        // Predicated region
        $region61: #{umt5_dense_gated_act_dense.1} parent=35 // pred_check
          %p713 = pneg %p157
        $region62: #{umt5_dense_gated_act_dense.1} parent=35 // pred_check_branch
          %715 = sbr.rel (%p713) target = $region64
        $region63: #{umt5_dense_gated_act_dense.1} parent=35 // pred_region
          %s716 = smul.u32 2, %s27
          %s718 = ssub.s32 256, 256
          %719 = vsyncadd [#allocation5], %s718
          %s720 = smul.addr %s716, 128
          %s721 = scalar_lea.hbm %s4, %s720
          %s722 = sshll.u32 [#allocation11], 4
          %s723 = int_to_ptr.vmem [resolvable:$true] %s722
          %728 = dma.vmem_to_hbm [thread:$0]  %s723, 256, %s721, [#allocation5], 128, 128, 8
        $region64: #{umt5_dense_gated_act_dense.1} parent=35 // pred_fallthru
          _
        // Predicated region
        $region65: #{umt5_dense_gated_act_dense.1} parent=35 // pred_check
          %p729 = pneg %p157
        $region66: #{umt5_dense_gated_act_dense.1} parent=35 // pred_check_branch
          %731 = sbr.rel (%p729) target = $region68
        $region67: #{umt5_dense_gated_act_dense.1} parent=35 // pred_region
          %732 = dma.done [#allocation5], 256
        $region68: #{umt5_dense_gated_act_dense.1} parent=35 // pred_fallthru
          _
      $region36: #{umt5_dense_gated_act_dense.1} parent=5 // pred_fallthru
        _
      %p733 = scmp.le.s32.totalorder 2, %s18
      // Predicated region
      $region69: #{umt5_dense_gated_act_dense.1} parent=5 // pred_check
        %p734 = pneg %p733
      $region70: #{umt5_dense_gated_act_dense.1} parent=5 // pred_check_branch
        %736 = sbr.rel (%p734) target = $region72
      $region71: #{umt5_dense_gated_act_dense.1} parent=5 // pred_region
        %s737 = ssub.s32 %s18, 2
      $region72: #{umt5_dense_gated_act_dense.1} parent=5 // pred_fallthru
        _
    $region6: #{umt5_dense_gated_act_dense.1} parent=1 // loop_footer
      %s22 = sadd.s32 1, %s18
    $region7: #{umt5_dense_gated_act_dense.1} parent=1 // loop_footer_branch
      %17 = sbr.rel target = $region3
    $region8: #{umt5_dense_gated_act_dense.1} parent=1 // loop_exit
      _
    %738 = vsyncpa [#allocation4], 1
    %s739 = scalar_lea.sflag [#allocation4], 1
    %740 = vsyncpa %s739, 1
    %741 = vsyncpa [#allocation7], 1
    %s742 = scalar_lea.sflag [#allocation7], 1
    %743 = vsyncpa %s742, 1
    %744 = vsyncpa [#allocation10], 1
    %s745 = scalar_lea.sflag [#allocation10], 1
    %746 = vsyncpa %s745, 1
    %747 = vsyncpa [#allocation5], 1
    %s748 = scalar_lea.sflag [#allocation5], 1
    %749 = vsyncpa %s748, 1

</llo_original>
